<compile_context>
chip_gen: v7x
topology: tpu7x:2x2x1
jax: 0.10.0
libtpu: 0.0.40
codegen_flags: <defaults>
</compile_context>

<pallas_src>
import functools

import jax
import jax.numpy as jnp
from jax.experimental import pallas as pl
from jax.experimental.pallas import tpu as pltpu


def _round_up(x, m):
    return ((x + m - 1) // m) * m


def _vmem_budget_bytes():
    """~80% of physical VMEM (headroom for Mosaic scratch / pipeline state)."""
    cap = 64 * 1024 * 1024  # conservative default (v7x per-TC VMEM)
    try:
        info = pltpu.get_tpu_info()
        cap = int(getattr(info, "vmem_capacity_bytes", cap) or cap)
    except Exception:
        pass
    return int(cap * 0.8)


def _mlp_head_kernel(x_ref, w1_ref, b1_ref, g_ref, beta_ref, w2_ref, b2_ref,
                     o_ref, pool_ref, *, inv_hw):
    hw_i = pl.program_id(1)

    @pl.when(hw_i == 0)
    def _():
        pool_ref[...] = jnp.zeros_like(pool_ref)

    # x_ref is a (tb, C, hw_chunk) slab of the native NCHW tensor; the global
    # average pool is a lane (XLU) reduction, accumulated in f32 scratch.
    pool_ref[...] += jnp.sum(x_ref[...].astype(jnp.float32), axis=-1)

    @pl.when(hw_i == pl.num_programs(1) - 1)
    def _():
        pooled = pool_ref[...] * inv_hw                               # (tb, C)

        # fc1 on the MXU: bf16 operands, f32 accumulation.
        h = jnp.dot(pooled.astype(jnp.bfloat16), w1_ref[...],
                    preferred_element_type=jnp.float32) + b1_ref[...]

        # Exact GELU (erf-based, matches torch.nn.GELU default), f32.
        h = 0.5 * h * (1.0 + jax.lax.erf(h * 0.7071067811865476))

        # LayerNorm over hidden, eps=1e-6, single-pass variance E[h^2]-mu^2.
        mu = jnp.mean(h, axis=-1, keepdims=True)
        var = jnp.maximum(jnp.mean(h * h, axis=-1, keepdims=True) - mu * mu,
                          0.0)
        h = (h - mu) * jax.lax.rsqrt(var + 1e-6)
        h = h * g_ref[...] + beta_ref[...]

        # Dropout p=0.0 -> identity.

        # fc2 on the MXU; lane-dense (128-padded) output columns.
        o_ref[...] = (jnp.dot(h.astype(jnp.bfloat16), w2_ref[...],
                              preferred_element_type=jnp.float32)
                      + b2_ref[...])


def mlp_classifier_head(x_nchw, w1, b1, gamma, beta, w2, b2, *,
                        block_b=256, max_hw_chunk=None):
    """x_nchw: (B, C, H, W), any float dtype (f32/bf16 streamed as-is).
    w1: (C, hidden), w2: (hidden, num_classes) (transposed vs torch Linear).
    Returns logits (B, num_classes) in float32."""
    B, C, H, W = x_nchw.shape
    HW = H * W
    hidden = w1.shape[1]
    num_classes = w2.shape[1]

    # Native NCHW layout: only merge the trailing H,W dims (free reshape),
    # no transpose and no dtype copy of the big activation tensor.
    x = x_nchw.reshape(B, C, HW)
    x_item = jnp.dtype(x.dtype).itemsize

    # Lane-dense output: pad num_classes (and w2/b2) to a multiple of 128.
    nc_pad = _round_up(num_classes, 128)

    # Resident operand footprint (bf16 weights + f32 vectors), single-buffered.
    resident_bytes = ((C * hidden + hidden * nc_pad) * 2
                      + (3 * hidden + nc_pad) * 4)

    vmem_budget = _vmem_budget_bytes()

    # ---- choose batch tile tb and spatial chunk from the VMEM budget -------
    b_pad8 = _round_up(B, 8)
    tb = min(block_b, b_pad8)
    if b_pad8 // tb < 2 and b_pad8 >= 16:
        # >=2 batch grid steps so v7x's two TensorCores both get work.
        tb = _round_up(b_pad8 // 2, 8)

    hw_cands = [HW]
    if HW % 128 == 0:
        c = HW
        while c > 128 and (c // 2) % 128 == 0:
            c //= 2
            hw_cands.append(c)           # all are divisors of HW, mult. of 128
    if max_hw_chunk is not None:
        restricted = [c for c in hw_cands if c <= max_hw_chunk]
        if restricted:
            hw_cands = restricted

    def _fits(tb_, hw_):
        streamed = 2 * tb_ * C * hw_ * x_item + 2 * tb_ * nc_pad * 4
        scratch = tb_ * C * 4
        return streamed + scratch + resident_bytes + (2 << 20) <= vmem_budget

    hw_chunk = None
    while hw_chunk is None:
        for cand in hw_cands:
            if _fits(tb, cand):
                hw_chunk = cand
                break
        if hw_chunk is None:
            if tb <= 8:
                hw_chunk = hw_cands[-1]   # smallest chunk; best effort
            else:
                tb = max(8, _round_up(tb // 2, 8))

    b_pad = _round_up(B, tb)
    if b_pad != B:
        x = jnp.pad(x, ((0, b_pad - B), (0, 0), (0, 0)))

    if nc_pad != num_classes:
        w2 = jnp.pad(w2, ((0, 0), (0, nc_pad - num_classes)))
        b2 = jnp.pad(b2, ((0, nc_pad - num_classes),))

    # bf16 weights: MXU-native, halves resident VMEM/DMA footprint.
    w1_bf = w1.astype(jnp.bfloat16)
    w2_bf = w2.astype(jnp.bfloat16)
    b1_f = b1.astype(jnp.float32).reshape(1, hidden)
    g_f = gamma.astype(jnp.float32).reshape(1, hidden)
    be_f = beta.astype(jnp.float32).reshape(1, hidden)
    b2_f = b2.astype(jnp.float32).reshape(1, nc_pad)

    grid = (b_pad // tb, HW // hw_chunk)

    flops = (b_pad * C * HW                      # pooling adds
             + 2 * b_pad * C * hidden            # fc1
             + 2 * b_pad * hidden * nc_pad)      # fc2
    bytes_accessed = (b_pad * C * HW * x_item
                      + (C * hidden + hidden * nc_pad) * 2
                      + (3 * hidden + nc_pad) * 4
                      + b_pad * nc_pad * 4)

    def _resident_spec(shape, single_buffer):
        ndim = len(shape)
        imap = lambda b, h, _n=ndim: (0,) * _n
        if single_buffer:
            return pl.BlockSpec(shape, imap, pipeline_mode=pl.Buffered(1))
        return pl.BlockSpec(shape, imap)

    def _build(single_buffer_residents):
        in_specs = [
            # streamed x tile, native (B, C, HW) layout
            pl.BlockSpec((tb, C, hw_chunk), lambda b, h: (b, 0, h)),
            _resident_spec((C, hidden), single_buffer_residents),     # w1
            _resident_spec((1, hidden), single_buffer_residents),     # b1
            _resident_spec((1, hidden), single_buffer_residents),     # gamma
            _resident_spec((1, hidden), single_buffer_residents),     # beta
            _resident_spec((hidden, nc_pad), single_buffer_residents),  # w2
            _resident_spec((1, nc_pad), single_buffer_residents),     # b2
        ]
        out_specs = pl.BlockSpec((tb, nc_pad), lambda b, h: (b, 0))

        return pl.pallas_call(
            functools.partial(_mlp_head_kernel, inv_hw=1.0 / HW),
            out_shape=jax.ShapeDtypeStruct((b_pad, nc_pad), jnp.float32),
            grid=grid,
            in_specs=in_specs,
            out_specs=out_specs,
            scratch_shapes=[pltpu.VMEM((tb, C), jnp.float32)],
            compiler_params=pltpu.CompilerParams(
                dimension_semantics=("parallel", "arbitrary"),
                vmem_limit_bytes=vmem_budget),
            cost_estimate=pl.CostEstimate(
                flops=flops,
                transcendentals=b_pad * hidden,
                bytes_accessed=bytes_accessed),
        )

    args = (x, w1_bf, b1_f, g_f, be_f, w2_bf, b2_f)
    try:
        out = jax.block_until_ready(_build(True)(*args))
    except Exception:
        # Fallback if single-buffered (pl.Buffered(1)) residents are rejected.
        out = _build(False)(*args)

    return out[:B, :num_classes]


def _reference(x_nchw, w1, b1, gamma, beta, w2, b2):
    pooled = jnp.mean(x_nchw.astype(jnp.float32), axis=(2, 3))
    h = pooled @ w1 + b1
    h = jax.nn.gelu(h, approximate=False)
    mu = jnp.mean(h, axis=-1, keepdims=True)
    var = jnp.mean((h - mu) ** 2, axis=-1, keepdims=True)
    h = (h - mu) / jnp.sqrt(var + 1e-6)
    h = h * gamma + beta
    return h @ w2 + b2


if __name__ == "__main__":
    # Small shapes consistent with the module: in_features=C, mlp_ratio=3.
    B, C, H, W = 2, 4, 16, 16
    mlp_ratio = 3
    hidden = int(mlp_ratio * C)     # 12
    num_classes = 10

    key = jax.random.PRNGKey(0)
    kx, k1, kb1, kg, kbe, k2, kb2 = jax.random.split(key, 7)

    x = jax.random.normal(kx, (B, C, H, W), dtype=jnp.float32)
    # fc1: Linear(C, hidden); stored as (C, hidden) i.e. transposed vs torch.
    w1 = jax.random.normal(k1, (C, hidden), dtype=jnp.float32) * 0.1
    b1 = jax.random.normal(kb1, (hidden,), dtype=jnp.float32) * 0.1
    # LayerNorm affine params.
    gamma = 1.0 + 0.1 * jax.random.normal(kg, (hidden,), dtype=jnp.float32)
    beta = 0.1 * jax.random.normal(kbe, (hidden,), dtype=jnp.float32)
    # fc2: Linear(hidden, num_classes); stored as (hidden, num_classes).
    w2 = jax.random.normal(k2, (hidden, num_classes), dtype=jnp.float32) * 0.1
    b2 = jax.random.normal(kb2, (num_classes,), dtype=jnp.float32) * 0.1

    ref = _reference(x, w1, b1, gamma, beta, w2, b2)

    # Default tiling (single HW step at this small size).
    out = mlp_classifier_head(x, w1, b1, gamma, beta, w2, b2)
    out = jax.block_until_ready(out)
    assert out.shape == (B, num_classes)
    assert jnp.allclose(out, ref, atol=3e-2, rtol=3e-2), (
        jnp.max(jnp.abs(out - ref)))

    # Forced spatial chunking to exercise the HW-axis pooled accumulator path.
    out2 = mlp_classifier_head(x, w1, b1, gamma, beta, w2, b2,
                               max_hw_chunk=128)
    out2 = jax.block_until_ready(out2)
    assert out2.shape == (B, num_classes)
    assert jnp.allclose(out2, ref, atol=3e-2, rtol=3e-2), (
        jnp.max(jnp.abs(out2 - ref)))

    print("KERNEL_OK")
</pallas_src>

<mosaic_0001>
module attributes {stable_mosaic.version = 11 : i64} {
  func.func @_mlp_head_kernel(%arg0: i32, %arg1: i32, %arg2: memref<8x4x256xf32, #tpu.memory_space<vmem>>, %arg3: memref<4x12xbf16, #tpu.memory_space<vmem>>, %arg4: memref<1x12xf32, #tpu.memory_space<vmem>>, %arg5: memref<1x12xf32, #tpu.memory_space<vmem>>, %arg6: memref<1x12xf32, #tpu.memory_space<vmem>>, %arg7: memref<12x128xbf16, #tpu.memory_space<vmem>>, %arg8: memref<1x128xf32, #tpu.memory_space<vmem>>, %arg9: memref<8x128xf32, #tpu.memory_space<vmem>>, %arg10: memref<8x4xf32, #tpu.memory_space<vmem>>) attributes {dimension_semantics = [#tpu.dimension_semantics<parallel>, #tpu.dimension_semantics<arbitrary>], iteration_bounds = array<i64: 1, 1>, scalar_prefetch = 0 : i64, scratch_operands = 1 : i64, tpu.core_type = #tpu.core_type<tc>, window_params = [{transform_indices = @transform_0, window_bounds = array<i64: 8, 4, 256>}, {pipeline_mode = #tpu.pipeline_mode<synchronous>, transform_indices = @transform_1, window_bounds = array<i64: 4, 12>}, {pipeline_mode = #tpu.pipeline_mode<synchronous>, transform_indices = @transform_2, window_bounds = array<i64: 1, 12>}, {pipeline_mode = #tpu.pipeline_mode<synchronous>, transform_indices = @transform_3, window_bounds = array<i64: 1, 12>}, {pipeline_mode = #tpu.pipeline_mode<synchronous>, transform_indices = @transform_4, window_bounds = array<i64: 1, 12>}, {pipeline_mode = #tpu.pipeline_mode<synchronous>, transform_indices = @transform_5, window_bounds = array<i64: 12, 128>}, {pipeline_mode = #tpu.pipeline_mode<synchronous>, transform_indices = @transform_6, window_bounds = array<i64: 1, 128>}, {transform_indices = @transform_7, window_bounds = array<i64: 8, 128>}]} {
    %c0_i32 = arith.constant 0 : i32
    %0 = arith.cmpi eq, %arg1, %c0_i32 : i32
    %1 = arith.extui %0 : i1 to i32
    %c0_i32_0 = arith.constant 0 : i32
    %2 = arith.cmpi ne, %1, %c0_i32_0 : i32
    scf.if %2 {
      %cst_9 = arith.constant 0.000000e+00 : f32
      %11 = vector.broadcast %cst_9 : f32 to vector<8x4xf32>
      %c0_10 = arith.constant 0 : index
      %c0_11 = arith.constant 0 : index
      %12 = vector.load %arg10[%c0_10, %c0_11] : memref<8x4xf32, #tpu.memory_space<vmem>>, vector<8x4xf32>
      tpu.vector_store %arg10[%c0_10, %c0_11], %11 {strides = array<i32>} : memref<8x4xf32, #tpu.memory_space<vmem>>, vector<8x4xf32>,
    } else {
    }
    %c0 = arith.constant 0 : index
    %c0_1 = arith.constant 0 : index
    %3 = vector.load %arg10[%c0, %c0_1] : memref<8x4xf32, #tpu.memory_space<vmem>>, vector<8x4xf32>
    %c0_2 = arith.constant 0 : index
    %c0_3 = arith.constant 0 : index
    %c0_4 = arith.constant 0 : index
    %4 = vector.load %arg2[%c0_2, %c0_3, %c0_4] : memref<8x4x256xf32, #tpu.memory_space<vmem>>, vector<8x4x256xf32>
    %cst = arith.constant dense<0.000000e+00> : vector<8x4xf32>
    %5 = vector.multi_reduction <add>, %4, %cst [2] : vector<8x4x256xf32> to vector<8x4xf32>
    %6 = arith.addf %3, %5 : vector<8x4xf32>
    %c0_5 = arith.constant 0 : index
    %c0_6 = arith.constant 0 : index
    %7 = vector.load %arg10[%c0_5, %c0_6] : memref<8x4xf32, #tpu.memory_space<vmem>>, vector<8x4xf32>
    tpu.vector_store %arg10[%c0_5, %c0_6], %6 {strides = array<i32>} : memref<8x4xf32, #tpu.memory_space<vmem>>, vector<8x4xf32>,
    %c0_i32_7 = arith.constant 0 : i32
    %8 = arith.cmpi eq, %arg1, %c0_i32_7 : i32
    %9 = arith.extui %8 : i1 to i32
    %c0_i32_8 = arith.constant 0 : i32
    %10 = arith.cmpi ne, %9, %c0_i32_8 : i32
    scf.if %10 {
      %c0_9 = arith.constant 0 : index
      %c0_10 = arith.constant 0 : index
      %11 = vector.load %arg10[%c0_9, %c0_10] : memref<8x4xf32, #tpu.memory_space<vmem>>, vector<8x4xf32>
      %cst_11 = arith.constant 3.906250e-03 : f32
      %12 = vector.broadcast %cst_11 : f32 to vector<8x4xf32>
      %13 = arith.mulf %11, %12 : vector<8x4xf32>
      %14 = arith.truncf %13 : vector<8x4xf32> to vector<8x4xbf16>
      %c0_12 = arith.constant 0 : index
      %c0_13 = arith.constant 0 : index
      %15 = vector.load %arg3[%c0_12, %c0_13] : memref<4x12xbf16, #tpu.memory_space<vmem>>, vector<4x12xbf16>
      %cst_14 = arith.constant dense<0.000000e+00> : vector<8x12xf32>
      %16 = tpu.matmul %14, %15, %cst_14 {dimension_numbers = #tpu.dot_dimension_numbers<[1], [0], [0], [1], [0, 0, 1, 1], [], []>} : vector<8x4xbf16>, vector<4x12xbf16>, vector<8x12xf32> -> vector<8x12xf32>
      %c0_15 = arith.constant 0 : index
      %c0_16 = arith.constant 0 : index
      %17 = vector.load %arg4[%c0_15, %c0_16] : memref<1x12xf32, #tpu.memory_space<vmem>>, vector<1x12xf32>
      %18 = vector.broadcast %17 : vector<1x12xf32> to vector<8x12xf32>
      %19 = arith.addf %16, %18 : vector<8x12xf32>
      %cst_17 = arith.constant 5.000000e-01 : f32
      %20 = vector.broadcast %cst_17 : f32 to vector<8x12xf32>
      %21 = arith.mulf %20, %19 : vector<8x12xf32>
      %cst_18 = arith.constant 0.707106769 : f32
      %22 = vector.broadcast %cst_18 : f32 to vector<8x12xf32>
      %23 = arith.mulf %19, %22 : vector<8x12xf32>
      %24 = math.erf %23 : vector<8x12xf32>
      %cst_19 = arith.constant 1.000000e+00 : f32
      %25 = vector.broadcast %cst_19 : f32 to vector<8x12xf32>
      %26 = arith.addf %25, %24 : vector<8x12xf32>
      %27 = arith.mulf %21, %26 : vector<8x12xf32>
      %cst_20 = arith.constant dense<0.000000e+00> : vector<8xf32>
      %28 = vector.multi_reduction <add>, %27, %cst_20 [1] : vector<8x12xf32> to vector<8xf32>
      %29 = vector.shape_cast %28 : vector<8xf32> to vector<8x1xf32>
      %cst_21 = arith.constant 1.200000e+01 : f32
      %30 = vector.broadcast %cst_21 : f32 to vector<8x1xf32>
      %31 = arith.divf %29, %30 : vector<8x1xf32>
      %32 = arith.mulf %27, %27 : vector<8x12xf32>
      %cst_22 = arith.constant dense<0.000000e+00> : vector<8xf32>
      %33 = vector.multi_reduction <add>, %32, %cst_22 [1] : vector<8x12xf32> to vector<8xf32>
      %34 = vector.shape_cast %33 : vector<8xf32> to vector<8x1xf32>
      %cst_23 = arith.constant 1.200000e+01 : f32
      %35 = vector.broadcast %cst_23 : f32 to vector<8x1xf32>
      %36 = arith.divf %34, %35 : vector<8x1xf32>
      %37 = arith.mulf %31, %31 : vector<8x1xf32>
      %38 = arith.subf %36, %37 : vector<8x1xf32>
      %cst_24 = arith.constant 0.000000e+00 : f32
      %39 = vector.broadcast %cst_24 : f32 to vector<8x1xf32>
      %40 = arith.maximumf %38, %39 : vector<8x1xf32>
      %41 = vector.broadcast %31 : vector<8x1xf32> to vector<8x12xf32>
      %42 = arith.subf %27, %41 : vector<8x12xf32>
      %cst_25 = arith.constant 9.99999997E-7 : f32
      %43 = vector.broadcast %cst_25 : f32 to vector<8x1xf32>
      %44 = arith.addf %40, %43 : vector<8x1xf32>
      %45 = math.rsqrt %44 : vector<8x1xf32>
      %46 = vector.broadcast %45 : vector<8x1xf32> to vector<8x12xf32>
      %47 = arith.mulf %42, %46 : vector<8x12xf32>
      %c0_26 = arith.constant 0 : index
      %c0_27 = arith.constant 0 : index
      %48 = vector.load %arg5[%c0_26, %c0_27] : memref<1x12xf32, #tpu.memory_space<vmem>>, vector<1x12xf32>
      %49 = vector.broadcast %48 : vector<1x12xf32> to vector<8x12xf32>
      %50 = arith.mulf %47, %49 : vector<8x12xf32>
      %c0_28 = arith.constant 0 : index
      %c0_29 = arith.constant 0 : index
      %51 = vector.load %arg6[%c0_28, %c0_29] : memref<1x12xf32, #tpu.memory_space<vmem>>, vector<1x12xf32>
      %52 = vector.broadcast %51 : vector<1x12xf32> to vector<8x12xf32>
      %53 = arith.addf %50, %52 : vector<8x12xf32>
      %54 = arith.truncf %53 : vector<8x12xf32> to vector<8x12xbf16>
      %c0_30 = arith.constant 0 : index
      %c0_31 = arith.constant 0 : index
      %55 = vector.load %arg7[%c0_30, %c0_31] : memref<12x128xbf16, #tpu.memory_space<vmem>>, vector<12x128xbf16>
      %cst_32 = arith.constant dense<0.000000e+00> : vector<8x128xf32>
      %56 = tpu.matmul %54, %55, %cst_32 {dimension_numbers = #tpu.dot_dimension_numbers<[1], [0], [0], [1], [0, 0, 1, 1], [], []>} : vector<8x12xbf16>, vector<12x128xbf16>, vector<8x128xf32> -> vector<8x128xf32>
      %c0_33 = arith.constant 0 : index
      %c0_34 = arith.constant 0 : index
      %57 = vector.load %arg8[%c0_33, %c0_34] : memref<1x128xf32, #tpu.memory_space<vmem>>, vector<1x128xf32>
      %58 = vector.broadcast %57 : vector<1x128xf32> to vector<8x128xf32>
      %59 = arith.addf %56, %58 : vector<8x128xf32>
      %c0_35 = arith.constant 0 : index
      %c0_36 = arith.constant 0 : index
      %60 = vector.load %arg9[%c0_35, %c0_36] : memref<8x128xf32, #tpu.memory_space<vmem>>, vector<8x128xf32>
      tpu.vector_store %arg9[%c0_35, %c0_36], %59 {strides = array<i32>} : memref<8x128xf32, #tpu.memory_space<vmem>>, vector<8x128xf32>,
    } else {
    }
    return
  }
  func.func @transform_0(%arg0: i32, %arg1: i32) -> (i32, i32, i32) {
    %c0_i32 = arith.constant 0 : i32
    %c0_i32_0 = arith.constant 0 : i32
    return %arg0, %c0_i32, %arg1 : i32, i32, i32
  }
  func.func @transform_1(%arg0: i32, %arg1: i32) -> (i32, i32) {
    %c0_i32 = arith.constant 0 : i32
    %c0_i32_0 = arith.constant 0 : i32
    %c0_i32_1 = arith.constant 0 : i32
    return %c0_i32, %c0_i32_0 : i32, i32
  }
  func.func @transform_2(%arg0: i32, %arg1: i32) -> (i32, i32) {
    %c0_i32 = arith.constant 0 : i32
    %c0_i32_0 = arith.constant 0 : i32
    %c0_i32_1 = arith.constant 0 : i32
    return %c0_i32, %c0_i32_0 : i32, i32
  }
  func.func @transform_3(%arg0: i32, %arg1: i32) -> (i32, i32) {
    %c0_i32 = arith.constant 0 : i32
    %c0_i32_0 = arith.constant 0 : i32
    %c0_i32_1 = arith.constant 0 : i32
    return %c0_i32, %c0_i32_0 : i32, i32
  }
  func.func @transform_4(%arg0: i32, %arg1: i32) -> (i32, i32) {
    %c0_i32 = arith.constant 0 : i32
    %c0_i32_0 = arith.constant 0 : i32
    %c0_i32_1 = arith.constant 0 : i32
    return %c0_i32, %c0_i32_0 : i32, i32
  }
  func.func @transform_5(%arg0: i32, %arg1: i32) -> (i32, i32) {
    %c0_i32 = arith.constant 0 : i32
    %c0_i32_0 = arith.constant 0 : i32
    %c0_i32_1 = arith.constant 0 : i32
    return %c0_i32, %c0_i32_0 : i32, i32
  }
  func.func @transform_6(%arg0: i32, %arg1: i32) -> (i32, i32) {
    %c0_i32 = arith.constant 0 : i32
    %c0_i32_0 = arith.constant 0 : i32
    %c0_i32_1 = arith.constant 0 : i32
    return %c0_i32, %c0_i32_0 : i32, i32
  }
  func.func @transform_7(%arg0: i32, %arg1: i32) -> (i32, i32) {
    %c0_i32 = arith.constant 0 : i32
    %c0_i32_0 = arith.constant 0 : i32
    return %arg0, %c0_i32 : i32, i32
  }
}

module attributes {stable_mosaic.version = 11 : i64} {
  func.func @_mlp_head_kernel(%arg0: i32, %arg1: i32, %arg2: memref<8x4x256xf32, #tpu.memory_space<vmem>>, %arg3: memref<4x12xbf16, #tpu.memory_space<vmem>>, %arg4: memref<1x12xf32, #tpu.memory_space<vmem>>, %arg5: memref<1x12xf32, #tpu.memory_space<vmem>>, %arg6: memref<1x12xf32, #tpu.memory_space<vmem>>, %arg7: memref<12x128xbf16, #tpu.memory_space<vmem>>, %arg8: memref<1x128xf32, #tpu.memory_space<vmem>>, %arg9: memref<8x128xf32, #tpu.memory_space<vmem>>, %arg10: memref<8x4xf32, #tpu.memory_space<vmem>>) attributes {dimension_semantics = [#tpu.dimension_semantics<parallel>, #tpu.dimension_semantics<arbitrary>], iteration_bounds = array<i64: 1, 1>, scalar_prefetch = 0 : i64, scratch_operands = 1 : i64, tpu.core_type = #tpu.core_type<tc>, window_params = [{transform_indices = @transform_0, window_bounds = array<i64: 8, 4, 256>}, {pipeline_mode = #tpu.pipeline_mode<synchronous>, transform_indices = @transform_1, window_bounds = array<i64: 4, 12>}, {pipeline_mode = #tpu.pipeline_mode<synchronous>, transform_indices = @transform_2, window_bounds = array<i64: 1, 12>}, {pipeline_mode = #tpu.pipeline_mode<synchronous>, transform_indices = @transform_3, window_bounds = array<i64: 1, 12>}, {pipeline_mode = #tpu.pipeline_mode<synchronous>, transform_indices = @transform_4, window_bounds = array<i64: 1, 12>}, {pipeline_mode = #tpu.pipeline_mode<synchronous>, transform_indices = @transform_5, window_bounds = array<i64: 12, 128>}, {pipeline_mode = #tpu.pipeline_mode<synchronous>, transform_indices = @transform_6, window_bounds = array<i64: 1, 128>}, {transform_indices = @transform_7, window_bounds = array<i64: 8, 128>}]} {
    %c0_i32 = arith.constant 0 : i32
    %0 = arith.cmpi eq, %arg1, %c0_i32 : i32
    %1 = arith.extui %0 : i1 to i32
    %c0_i32_0 = arith.constant 0 : i32
    %2 = arith.cmpi ne, %1, %c0_i32_0 : i32
    scf.if %2 {
      %cst_9 = arith.constant 0.000000e+00 : f32
      %11 = vector.broadcast %cst_9 : f32 to vector<8x4xf32>
      %c0_10 = arith.constant 0 : index
      %c0_11 = arith.constant 0 : index
      %12 = vector.load %arg10[%c0_10, %c0_11] : memref<8x4xf32, #tpu.memory_space<vmem>>, vector<8x4xf32>
      tpu.vector_store %arg10[%c0_10, %c0_11], %11 {strides = array<i32>} : memref<8x4xf32, #tpu.memory_space<vmem>>, vector<8x4xf32>,
    } else {
    }
    %c0 = arith.constant 0 : index
    %c0_1 = arith.constant 0 : index
    %3 = vector.load %arg10[%c0, %c0_1] : memref<8x4xf32, #tpu.memory_space<vmem>>, vector<8x4xf32>
    %c0_2 = arith.constant 0 : index
    %c0_3 = arith.constant 0 : index
    %c0_4 = arith.constant 0 : index
    %4 = vector.load %arg2[%c0_2, %c0_3, %c0_4] : memref<8x4x256xf32, #tpu.memory_space<vmem>>, vector<8x4x256xf32>
    %cst = arith.constant dense<0.000000e+00> : vector<8x4xf32>
    %5 = vector.multi_reduction <add>, %4, %cst [2] : vector<8x4x256xf32> to vector<8x4xf32>
    %6 = arith.addf %3, %5 : vector<8x4xf32>
    %c0_5 = arith.constant 0 : index
    %c0_6 = arith.constant 0 : index
    %7 = vector.load %arg10[%c0_5, %c0_6] : memref<8x4xf32, #tpu.memory_space<vmem>>, vector<8x4xf32>
    tpu.vector_store %arg10[%c0_5, %c0_6], %6 {strides = array<i32>} : memref<8x4xf32, #tpu.memory_space<vmem>>, vector<8x4xf32>,
    %c0_i32_7 = arith.constant 0 : i32
    %8 = arith.cmpi eq, %arg1, %c0_i32_7 : i32
    %9 = arith.extui %8 : i1 to i32
    %c0_i32_8 = arith.constant 0 : i32
    %10 = arith.cmpi ne, %9, %c0_i32_8 : i32
    scf.if %10 {
      %c0_9 = arith.constant 0 : index
      %c0_10 = arith.constant 0 : index
      %11 = vector.load %arg10[%c0_9, %c0_10] : memref<8x4xf32, #tpu.memory_space<vmem>>, vector<8x4xf32>
      %cst_11 = arith.constant 3.906250e-03 : f32
      %12 = vector.broadcast %cst_11 : f32 to vector<8x4xf32>
      %13 = arith.mulf %11, %12 : vector<8x4xf32>
      %14 = arith.truncf %13 : vector<8x4xf32> to vector<8x4xbf16>
      %c0_12 = arith.constant 0 : index
      %c0_13 = arith.constant 0 : index
      %15 = vector.load %arg3[%c0_12, %c0_13] : memref<4x12xbf16, #tpu.memory_space<vmem>>, vector<4x12xbf16>
      %cst_14 = arith.constant dense<0.000000e+00> : vector<8x12xf32>
      %16 = tpu.matmul %14, %15, %cst_14 {dimension_numbers = #tpu.dot_dimension_numbers<[1], [0], [0], [1], [0, 0, 1, 1], [], []>} : vector<8x4xbf16>, vector<4x12xbf16>, vector<8x12xf32> -> vector<8x12xf32>
      %c0_15 = arith.constant 0 : index
      %c0_16 = arith.constant 0 : index
      %17 = vector.load %arg4[%c0_15, %c0_16] : memref<1x12xf32, #tpu.memory_space<vmem>>, vector<1x12xf32>
      %18 = vector.broadcast %17 : vector<1x12xf32> to vector<8x12xf32>
      %19 = arith.addf %16, %18 : vector<8x12xf32>
      %cst_17 = arith.constant 5.000000e-01 : f32
      %20 = vector.broadcast %cst_17 : f32 to vector<8x12xf32>
      %21 = arith.mulf %20, %19 : vector<8x12xf32>
      %cst_18 = arith.constant 0.707106769 : f32
      %22 = vector.broadcast %cst_18 : f32 to vector<8x12xf32>
      %23 = arith.mulf %19, %22 : vector<8x12xf32>
      %24 = math.erf %23 : vector<8x12xf32>
      %cst_19 = arith.constant 1.000000e+00 : f32
      %25 = vector.broadcast %cst_19 : f32 to vector<8x12xf32>
      %26 = arith.addf %25, %24 : vector<8x12xf32>
      %27 = arith.mulf %21, %26 : vector<8x12xf32>
      %cst_20 = arith.constant dense<0.000000e+00> : vector<8xf32>
      %28 = vector.multi_reduction <add>, %27, %cst_20 [1] : vector<8x12xf32> to vector<8xf32>
      %29 = vector.shape_cast %28 : vector<8xf32> to vector<8x1xf32>
      %cst_21 = arith.constant 1.200000e+01 : f32
      %30 = vector.broadcast %cst_21 : f32 to vector<8x1xf32>
      %31 = arith.divf %29, %30 : vector<8x1xf32>
      %32 = arith.mulf %27, %27 : vector<8x12xf32>
      %cst_22 = arith.constant dense<0.000000e+00> : vector<8xf32>
      %33 = vector.multi_reduction <add>, %32, %cst_22 [1] : vector<8x12xf32> to vector<8xf32>
      %34 = vector.shape_cast %33 : vector<8xf32> to vector<8x1xf32>
      %cst_23 = arith.constant 1.200000e+01 : f32
      %35 = vector.broadcast %cst_23 : f32 to vector<8x1xf32>
      %36 = arith.divf %34, %35 : vector<8x1xf32>
      %37 = arith.mulf %31, %31 : vector<8x1xf32>
      %38 = arith.subf %36, %37 : vector<8x1xf32>
      %cst_24 = arith.constant 0.000000e+00 : f32
      %39 = vector.broadcast %cst_24 : f32 to vector<8x1xf32>
      %40 = arith.maximumf %38, %39 : vector<8x1xf32>
      %41 = vector.broadcast %31 : vector<8x1xf32> to vector<8x12xf32>
      %42 = arith.subf %27, %41 : vector<8x12xf32>
      %cst_25 = arith.constant 9.99999997E-7 : f32
      %43 = vector.broadcast %cst_25 : f32 to vector<8x1xf32>
      %44 = arith.addf %40, %43 : vector<8x1xf32>
      %45 = math.rsqrt %44 : vector<8x1xf32>
      %46 = vector.broadcast %45 : vector<8x1xf32> to vector<8x12xf32>
      %47 = arith.mulf %42, %46 : vector<8x12xf32>
      %c0_26 = arith.constant 0 : index
      %c0_27 = arith.constant 0 : index
      %48 = vector.load %arg5[%c0_26, %c0_27] : memref<1x12xf32, #tpu.memory_space<vmem>>, vector<1x12xf32>
      %49 = vector.broadcast %48 : vector<1x12xf32> to vector<8x12xf32>
      %50 = arith.mulf %47, %49 : vector<8x12xf32>
      %c0_28 = arith.constant 0 : index
      %c0_29 = arith.constant 0 : index
      %51 = vector.load %arg6[%c0_28, %c0_29] : memref<1x12xf32, #tpu.memory_space<vmem>>, vector<1x12xf32>
      %52 = vector.broadcast %51 : vector<1x12xf32> to vector<8x12xf32>
      %53 = arith.addf %50, %52 : vector<8x12xf32>
      %54 = arith.truncf %53 : vector<8x12xf32> to vector<8x12xbf16>
      %c0_30 = arith.constant 0 : index
      %c0_31 = arith.constant 0 : index
      %55 = vector.load %arg7[%c0_30, %c0_31] : memref<12x128xbf16, #tpu.memory_space<vmem>>, vector<12x128xbf16>
      %cst_32 = arith.constant dense<0.000000e+00> : vector<8x128xf32>
      %56 = tpu.matmul %54, %55, %cst_32 {dimension_numbers = #tpu.dot_dimension_numbers<[1], [0], [0], [1], [0, 0, 1, 1], [], []>} : vector<8x12xbf16>, vector<12x128xbf16>, vector<8x128xf32> -> vector<8x128xf32>
      %c0_33 = arith.constant 0 : index
      %c0_34 = arith.constant 0 : index
      %57 = vector.load %arg8[%c0_33, %c0_34] : memref<1x128xf32, #tpu.memory_space<vmem>>, vector<1x128xf32>
      %58 = vector.broadcast %57 : vector<1x128xf32> to vector<8x128xf32>
      %59 = arith.addf %56, %58 : vector<8x128xf32>
      %c0_35 = arith.constant 0 : index
      %c0_36 = arith.constant 0 : index
      %60 = vector.load %arg9[%c0_35, %c0_36] : memref<8x128xf32, #tpu.memory_space<vmem>>, vector<8x128xf32>
      tpu.vector_store %arg9[%c0_35, %c0_36], %59 {strides = array<i32>} : memref<8x128xf32, #tpu.memory_space<vmem>>, vector<8x128xf32>,
    } else {
    }
    return
  }
  func.func @transform_0(%arg0: i32, %arg1: i32) -> (i32, i32, i32) {
    %c0_i32 = arith.constant 0 : i32
    %c0_i32_0 = arith.constant 0 : i32
    return %arg0, %c0_i32, %arg1 : i32, i32, i32
  }
  func.func @transform_1(%arg0: i32, %arg1: i32) -> (i32, i32) {
    %c0_i32 = arith.constant 0 : i32
    %c0_i32_0 = arith.constant 0 : i32
    %c0_i32_1 = arith.constant 0 : i32
    return %c0_i32, %c0_i32_0 : i32, i32
  }
  func.func @transform_2(%arg0: i32, %arg1: i32) -> (i32, i32) {
    %c0_i32 = arith.constant 0 : i32
    %c0_i32_0 = arith.constant 0 : i32
    %c0_i32_1 = arith.constant 0 : i32
    return %c0_i32, %c0_i32_0 : i32, i32
  }
  func.func @transform_3(%arg0: i32, %arg1: i32) -> (i32, i32) {
    %c0_i32 = arith.constant 0 : i32
    %c0_i32_0 = arith.constant 0 : i32
    %c0_i32_1 = arith.constant 0 : i32
    return %c0_i32, %c0_i32_0 : i32, i32
  }
  func.func @transform_4(%arg0: i32, %arg1: i32) -> (i32, i32) {
    %c0_i32 = arith.constant 0 : i32
    %c0_i32_0 = arith.constant 0 : i32
    %c0_i32_1 = arith.constant 0 : i32
    return %c0_i32, %c0_i32_0 : i32, i32
  }
  func.func @transform_5(%arg0: i32, %arg1: i32) -> (i32, i32) {
    %c0_i32 = arith.constant 0 : i32
    %c0_i32_0 = arith.constant 0 : i32
    %c0_i32_1 = arith.constant 0 : i32
    return %c0_i32, %c0_i32_0 : i32, i32
  }
  func.func @transform_6(%arg0: i32, %arg1: i32) -> (i32, i32) {
    %c0_i32 = arith.constant 0 : i32
    %c0_i32_0 = arith.constant 0 : i32
    %c0_i32_1 = arith.constant 0 : i32
    return %c0_i32, %c0_i32_0 : i32, i32
  }
  func.func @transform_7(%arg0: i32, %arg1: i32) -> (i32, i32) {
    %c0_i32 = arith.constant 0 : i32
    %c0_i32_0 = arith.constant 0 : i32
    return %arg0, %c0_i32 : i32, i32
  }
}

</mosaic_0001>

<llo_original>
// kernel: tpu_custom_call.1
$region0: #{tpu_custom_call.1}
  #allocation0 [shape = 'u32[]', space=smem, size = 0x4, offset = 0x4, fixed_abs, tag = 'smem constant byte address 0x4 - core index']
  #allocation1 [shape = 'u32[144,128]{1,0:T(1,128)}', space=vmem, size = 0x12000, scoped, tag = 'internal scratch']
  #allocation2 [shape = 'f32[8,4]{1,0:T(8,128)}', space=vmem, size = 0x1000, scoped, tag = 'scratch operand']
  %s0 = inlined_call_operand.hbm [shape: f32[8,4,256], index: 0, kind: input, shape index: {}]
  %s1 = inlined_call_operand.vmem [shape: bf16[4,12], index: 1, kind: input, shape index: {}]
  %s2 = inlined_call_operand.vmem [shape: f32[1,12], index: 2, kind: input, shape index: {}]
  %s3 = inlined_call_operand.vmem [shape: f32[1,12], index: 3, kind: input, shape index: {}]
  %s4 = inlined_call_operand.vmem [shape: f32[1,12], index: 4, kind: input, shape index: {}]
  %s5 = inlined_call_operand.vmem [shape: bf16[12,128], index: 5, kind: input, shape index: {}]
  %s6 = inlined_call_operand.vmem [shape: f32[1,128], index: 6, kind: input, shape index: {}]
  %s7 = inlined_call_operand.hbm [shape: f32[8,128], index: 7, kind: output, shape index: {}]
  %s8 = sld [smem:[#allocation0]]
  $region50: #{tpu_custom_call.1} parent=0
    _
  %s10 = ssub.s32 1, %s8
  %s11 = scalar_select 0, %s10, %s8
  $region1: #{tpu_custom_call.1} parent=0
    #allocation3 [shape = 'u8[32768]{0}', space=vmem, size = 0x8000, scoped, tag = 'input window, operand 0, single buffered']
    #allocation4 [shape = 's32[1]{0}', space=sflag, size = 0x4, scoped, tag = 'scoped memory for tpu_custom_call.1']
    #allocation5 [shape = 's32[1]{0}', space=sflag, size = 0x4, scoped, tag = 'scoped memory for tpu_custom_call.1']
    #allocation6 [shape = 'u8[4096]{0}', space=vmem, size = 0x1000, scoped, tag = 'output window, operand 0, single buffered']
    %12 = vsyncpa [#allocation4], 0
    %13 = vsyncpa [#allocation5], 0
    // Predicated region
    $region2: #{tpu_custom_call.1} parent=1 // pred_check
      _
    $region3: #{tpu_custom_call.1} parent=1 // pred_check_branch
      %15 = sbr.rel (0) target = $region5
    $region4: #{tpu_custom_call.1} parent=1 // pred_region
      %s17 = ssub.s32 1024, 1024
      %18 = vsyncadd [#allocation4], %s17
      %s19 = sshll.u32 [#allocation3], 4
      %s20 = int_to_ptr.vmem [resolvable:$true] %s19
      %25 = dma.hbm_to_vmem [thread:$0]  %s0, 1024, %s20, [#allocation4], 128, 128, 8
    $region5: #{tpu_custom_call.1} parent=1 // pred_fallthru
      _
    // Predicated region
    $region6: #{tpu_custom_call.1} parent=1 // pred_check
      _
    $region7: #{tpu_custom_call.1} parent=1 // pred_check_branch
      %27 = sbr.rel (0) target = $region9
    $region8: #{tpu_custom_call.1} parent=1 // pred_region
      _
    $region9: #{tpu_custom_call.1} parent=1 // pred_fallthru
      _
    // Predicated region
    $region10: #{tpu_custom_call.1} parent=1 // pred_check
      _
    $region11: #{tpu_custom_call.1} parent=1 // pred_check_branch
      %29 = sbr.rel (0) target = $region13
    $region12: #{tpu_custom_call.1} parent=1 // pred_region
      _
    $region13: #{tpu_custom_call.1} parent=1 // pred_fallthru
      _
    // Predicated region
    $region14: #{tpu_custom_call.1} parent=1 // pred_check
      _
    $region15: #{tpu_custom_call.1} parent=1 // pred_check_branch
      %31 = sbr.rel (0) target = $region17
    $region16: #{tpu_custom_call.1} parent=1 // pred_region
      _
    $region17: #{tpu_custom_call.1} parent=1 // pred_fallthru
      _
    // Predicated region
    $region18: #{tpu_custom_call.1} parent=1 // pred_check
      _
    $region19: #{tpu_custom_call.1} parent=1 // pred_check_branch
      %33 = sbr.rel (0) target = $region21
    $region20: #{tpu_custom_call.1} parent=1 // pred_region
      _
    $region21: #{tpu_custom_call.1} parent=1 // pred_fallthru
      _
    // Predicated region
    $region22: #{tpu_custom_call.1} parent=1 // pred_check
      _
    $region23: #{tpu_custom_call.1} parent=1 // pred_check_branch
      %35 = sbr.rel (0) target = $region25
    $region24: #{tpu_custom_call.1} parent=1 // pred_region
      _
    $region25: #{tpu_custom_call.1} parent=1 // pred_fallthru
      _
    // Predicated region
    $region26: #{tpu_custom_call.1} parent=1 // pred_check
      _
    $region27: #{tpu_custom_call.1} parent=1 // pred_check_branch
      %37 = sbr.rel (0) target = $region29
    $region28: #{tpu_custom_call.1} parent=1 // pred_region
      _
    $region29: #{tpu_custom_call.1} parent=1 // pred_fallthru
      _
    // Predicated region
    $region30: #{tpu_custom_call.1} parent=1 // pred_check
      _
    $region31: #{tpu_custom_call.1} parent=1 // pred_check_branch
      %39 = sbr.rel (0) target = $region33
    $region32: #{tpu_custom_call.1} parent=1 // pred_region
      %40 = dma.done [#allocation4], 1024
    $region33: #{tpu_custom_call.1} parent=1 // pred_fallthru
      _
    %p42 = scmp.eq.s32.totalorder 0, 0
    // Predicated region
    $region34: #{tpu_custom_call.1} parent=1 // pred_check
      %p43 = pneg %p42
    $region35: #{tpu_custom_call.1} parent=1 // pred_check_branch
      %45 = sbr.rel (%p43) target = $region37
    $region36: #{tpu_custom_call.1} parent=1 // pred_region
      %vm46 = vcmask 31744
      %47 = vst.msk [vmem:[#allocation2] sm:$0xff] %vm46, 0.0
    $region37: #{tpu_custom_call.1} parent=1 // pred_fallthru
      _
    %v48 = vld [vmem:[#allocation2] sm:$0xff]
    %v49 = vld [vmem:[#allocation3] sm:$0xff]
    %v50 = vld [vmem:[#allocation3 + $0x8] sm:$0xff]
    %v51 = vld [vmem:[#allocation3 + $0x10] sm:$0xff]
    %v52 = vld [vmem:[#allocation3 + $0x18] sm:$0xff]
    %v53 = vld [vmem:[#allocation3 + $0x20] sm:$0xff]
    %v54 = vld [vmem:[#allocation3 + $0x28] sm:$0xff]
    %v55 = vld [vmem:[#allocation3 + $0x30] sm:$0xff]
    %v56 = vld [vmem:[#allocation3 + $0x38] sm:$0xff]
    %v65 = vcombine.high %v49, %v49
    %v66 = vcombine.high %v50, %v50
    %v67 = vcombine.high %v51, %v51
    %v68 = vcombine.high %v52, %v52
    %v69 = vcombine.high %v53, %v53
    %v70 = vcombine.high %v54, %v54
    %v71 = vcombine.high %v55, %v55
    %v72 = vcombine.high %v56, %v56
    %vm81 = vcmask 1043456
    %v82 = vsel %vm81, %v49, 0.0
    %v83 = vsel %vm81, %v65, 0.0
    %v84 = vadd.f32 %v82, %v83
    %85 = vadd.xlane.f32.xlu0 %v84
    %v86 = vpop.xlane.xlu0 %85
    %v87 = vsel %vm81, %v50, 0.0
    %v88 = vsel %vm81, %v66, 0.0
    %v89 = vadd.f32 %v87, %v88
    %90 = vadd.xlane.f32.xlu0 %v89
    %v91 = vpop.xlane.xlu0 %90
    %v92 = vsel %vm81, %v51, 0.0
    %v93 = vsel %vm81, %v67, 0.0
    %v94 = vadd.f32 %v92, %v93
    %95 = vadd.xlane.f32.xlu0 %v94
    %v96 = vpop.xlane.xlu0 %95
    %v97 = vsel %vm81, %v52, 0.0
    %v98 = vsel %vm81, %v68, 0.0
    %v99 = vadd.f32 %v97, %v98
    %100 = vadd.xlane.f32.xlu0 %v99
    %v101 = vpop.xlane.xlu0 %100
    %v102 = vsel %vm81, %v53, 0.0
    %v103 = vsel %vm81, %v69, 0.0
    %v104 = vadd.f32 %v102, %v103
    %105 = vadd.xlane.f32.xlu0 %v104
    %v106 = vpop.xlane.xlu0 %105
    %v107 = vsel %vm81, %v54, 0.0
    %v108 = vsel %vm81, %v70, 0.0
    %v109 = vadd.f32 %v107, %v108
    %110 = vadd.xlane.f32.xlu0 %v109
    %v111 = vpop.xlane.xlu0 %110
    %v112 = vsel %vm81, %v55, 0.0
    %v113 = vsel %vm81, %v71, 0.0
    %v114 = vadd.f32 %v112, %v113
    %115 = vadd.xlane.f32.xlu0 %v114
    %v116 = vpop.xlane.xlu0 %115
    %v117 = vsel %vm81, %v56, 0.0
    %v118 = vsel %vm81, %v72, 0.0
    %v119 = vadd.f32 %v117, %v118
    %120 = vadd.xlane.f32.xlu0 %v119
    %v121 = vpop.xlane.xlu0 %120
    %v130 = vlaneseq
    %v131 = vand.u32 %v130, 127
    %v132 = vlaneseq
    %v133 = vshrl.u32 %v132, 7
    %v134 = vsub.s32 %v131, %v133
    %v135 = vrot.slane %v86, %v134
    %v136 = vlaneseq
    %v137 = vshrl.u32 %v136, 7
    %v138 = vsub.s32 %v131, %v137
    %v139 = vrot.slane %v91, %v138
    %v140 = vlaneseq
    %v141 = vshrl.u32 %v140, 7
    %v142 = vsub.s32 %v131, %v141
    %v143 = vrot.slane %v96, %v142
    %v144 = vlaneseq
    %v145 = vshrl.u32 %v144, 7
    %v146 = vsub.s32 %v131, %v145
    %v147 = vrot.slane %v101, %v146
    %v148 = vlaneseq
    %v149 = vshrl.u32 %v148, 7
    %v150 = vsub.s32 %v131, %v149
    %v151 = vrot.slane %v106, %v150
    %v152 = vlaneseq
    %v153 = vshrl.u32 %v152, 7
    %v154 = vsub.s32 %v131, %v153
    %v155 = vrot.slane %v111, %v154
    %v156 = vlaneseq
    %v157 = vshrl.u32 %v156, 7
    %v158 = vsub.s32 %v131, %v157
    %v159 = vrot.slane %v116, %v158
    %v160 = vlaneseq
    %v161 = vshrl.u32 %v160, 7
    %v162 = vsub.s32 %v131, %v161
    %v163 = vrot.slane %v121, %v162
    %vm164 = vcmask 1041409
    %v165 = vsel %vm164, %v139, %v135
    %vm166 = vcmask 1042434
    %v167 = vsel %vm166, %v143, %v165
    %vm168 = vcmask 1043459
    %v169 = vsel %vm168, %v147, %v167
    %vm170 = vcmask 1044484
    %v171 = vsel %vm170, %v151, %v169
    %vm172 = vcmask 1045509
    %v173 = vsel %vm172, %v155, %v171
    %vm174 = vcmask 1046534
    %v175 = vsel %vm174, %v159, %v173
    %vm176 = vcmask 1047559
    %v177 = vsel %vm176, %v163, %v175
    %v179 = vadd.f32 %v48, %v177
    %vm180 = vcmask 31744
    %181 = vst.msk [vmem:[#allocation2] sm:$0xff] %vm180, %v179
    // Predicated region
    $region38: #{tpu_custom_call.1} parent=1 // pred_check
      %p182 = pneg %p42
    $region39: #{tpu_custom_call.1} parent=1 // pred_check_branch
      %184 = sbr.rel (%p182) target = $region41
    $region40: #{tpu_custom_call.1} parent=1 // pred_region
      %v185 = vld [vmem:[#allocation2] sm:$0xff]
      %v186 = vmul.f32 %v185, 0.00390625
      %v187 = vpack.c.bf16 %v186, %v186
      %v188 = vld [vmem:[%s1] sm:$0x3]
      %v189 = vld [vmem:[%s2] sm:$0x1]
      %v191 = vlaneseq
      %v192 = vshrl.u32 %v191, 7
      %v193 = vsub.s32 0, %v192
      %v194 = vrot.slane %v189, %v193
      %v197 = vsel %vm180, %v187, 0
      %vm199 = vcmask 1041408
      %v201 = vsel %vm199, %v188, 0
      %203 = vmatprep.subr.bf16.mxu0 0
      %204 = vmatpush1.bf16.msra.mxu0 %v201
      %205 = vmatprep.subr.bf16.mxu0 0
      %206 = vmatpush1.bf16.msra.mxu0 0
      %207 = vmatprep.subr.bf16.mxu0 0
      %208 = vmatpush1.bf16.msra.mxu0 0
      %209 = vmatprep.subr.bf16.mxu0 0
      %210 = vmatpush1.bf16.msra.mxu0 0
      %211 = vmatprep.subr.bf16.mxu0 0
      %212 = vmatpush1.bf16.msra.mxu0 0
      %213 = vmatprep.subr.bf16.mxu0 0
      %214 = vmatpush1.bf16.msra.mxu0 0
      %215 = vmatprep.subr.bf16.mxu0 0
      %216 = vmatpush1.bf16.msra.mxu0 0
      %217 = vmatprep.subr.bf16.mxu0 0
      %218 = vmatpush1.bf16.msra.mxu0 0
      %219 = vmatprep.subr.bf16.mxu0 0
      %220 = vmatpush1.bf16.msra.mxu0 0
      %221 = vmatprep.subr.bf16.mxu0 0
      %222 = vmatpush1.bf16.msra.mxu0 0
      %223 = vmatprep.subr.bf16.mxu0 0
      %224 = vmatpush1.bf16.msra.mxu0 0
      %225 = vmatprep.subr.bf16.mxu0 0
      %226 = vmatpush1.bf16.msra.mxu0 0
      %227 = vmatprep.subr.bf16.mxu0 0
      %228 = vmatpush1.bf16.msra.mxu0 0
      %229 = vmatprep.subr.bf16.mxu0 0
      %230 = vmatpush1.bf16.msra.mxu0 0
      %231 = vmatprep.subr.bf16.mxu0 0
      %232 = vmatpush1.bf16.msra.mxu0 0
      %233 = vmatprep.subr.bf16.mxu0 0
      %234 = vmatpush1.bf16.msra.mxu0 0
      %235 = vmatprep.mubr.bf16.mxu0 0
      %236 = vmatmul.mubr.bf16.gmra.mrb[0].mxu0 %v197
      %v237 = vpop.f32.mrb[0].mxu0
      %v238 = vadd.f32 %v194, %v237
      %v239 = vpop.f32.mrb[0].mxu0
      %v240 = vpop.f32.mrb[0].mxu0
      %v241 = vpop.f32.mrb[0].mxu0
      %242 = vdwg.mxu0
      %v243 = vmul.f32 %v238, 0.5
      %v244 = vmul.f32 %v238, 0.70710677
      %v245 = verf.f32.pop %v244
      %v246 = vadd.f32 %v245, 1.0
      %v247 = vmul.f32 %v243, %v246
      %vm248 = vcmask 97280
      %v249 = vsel %vm248, %v247, 0.0
      %250 = vadd.xlane.f32.xlu0 %v249
      %v251 = vpop.xlane.xlu0 %250
      %v252 = vrcp.pop 12.0
      %v253 = vmul.f32 %v251, %v252
      %v254 = vmul.f32 %v247, %v247
      %v255 = vsel %vm248, %v254, 0.0
      %256 = vadd.xlane.f32.xlu0 %v255
      %v257 = vpop.xlane.xlu0 %256
      %v258 = vmul.f32 %v257, %v252
      %v259 = vmul.f32 %v253, %v253
      %v260 = vsub.f32 %v258, %v259
      %v261 = vmax.f32 %v260, 0.0
      %v262 = vsub.f32 %v247, %v253
      %v263 = vadd.f32 %v261, 1e-06
      %v264 = vrsqrt.pop %v263
      %v265 = vmul.f32 %v262, %v264
      %v266 = vld [vmem:[%s3] sm:$0x1]
      %v268 = vlaneseq
      %v269 = vshrl.u32 %v268, 7
      %v270 = vsub.s32 0, %v269
      %v271 = vrot.slane %v266, %v270
      %v273 = vmul.f32 %v265, %v271
      %v274 = vld [vmem:[%s4] sm:$0x1]
      %v276 = vlaneseq
      %v277 = vshrl.u32 %v276, 7
      %v278 = vsub.s32 0, %v277
      %v279 = vrot.slane %v274, %v278
      %v281 = vadd.f32 %v273, %v279
      %v282 = vpack.c.bf16 %v281, %v281
      %v283 = vld [vmem:[%s5] sm:$0xf]
      %v284 = vld [vmem:[%s5 + $0x4] sm:$0x3]
      %v285 = vld [vmem:[%s6] sm:$0x1]
      %v287 = vlaneseq
      %v288 = vshrl.u32 %v287, 7
      %v289 = vsub.s32 0, %v288
      %v290 = vrot.slane %v285, %v289
      %v294 = vunpack.c.l.b16 %v283
      %v295 = vunpack.c.l.b16 %v284
      %v296 = vpack.c.b16 %v295, %v294
      %v298 = vsel %vm248, %v282, 0
      %vm300 = vcmask 1045504
      %v302 = vsel %vm300, %v296, 0
      %304 = vmatprep.subr.bf16.mxu0 0
      %305 = vmatpush1.bf16.msra.mxu0 %v302
      %306 = vmatprep.subr.bf16.mxu0 0
      %307 = vmatpush1.bf16.msra.mxu0 0
      %308 = vmatprep.subr.bf16.mxu0 0
      %309 = vmatpush1.bf16.msra.mxu0 0
      %310 = vmatprep.subr.bf16.mxu0 0
      %311 = vmatpush1.bf16.msra.mxu0 0
      %312 = vmatprep.subr.bf16.mxu0 0
      %313 = vmatpush1.bf16.msra.mxu0 0
      %314 = vmatprep.subr.bf16.mxu0 0
      %315 = vmatpush1.bf16.msra.mxu0 0
      %316 = vmatprep.subr.bf16.mxu0 0
      %317 = vmatpush1.bf16.msra.mxu0 0
      %318 = vmatprep.subr.bf16.mxu0 0
      %319 = vmatpush1.bf16.msra.mxu0 0
      %320 = vmatprep.subr.bf16.mxu0 0
      %321 = vmatpush1.bf16.msra.mxu0 0
      %322 = vmatprep.subr.bf16.mxu0 0
      %323 = vmatpush1.bf16.msra.mxu0 0
      %324 = vmatprep.subr.bf16.mxu0 0
      %325 = vmatpush1.bf16.msra.mxu0 0
      %326 = vmatprep.subr.bf16.mxu0 0
      %327 = vmatpush1.bf16.msra.mxu0 0
      %328 = vmatprep.subr.bf16.mxu0 0
      %329 = vmatpush1.bf16.msra.mxu0 0
      %330 = vmatprep.subr.bf16.mxu0 0
      %331 = vmatpush1.bf16.msra.mxu0 0
      %332 = vmatprep.subr.bf16.mxu0 0
      %333 = vmatpush1.bf16.msra.mxu0 0
      %334 = vmatprep.subr.bf16.mxu0 0
      %335 = vmatpush1.bf16.msra.mxu0 0
      %336 = vmatprep.mubr.bf16.mxu0 0
      %337 = vmatmul.mubr.bf16.gmra.mrb[0].mxu0 %v298
      %v338 = vpop.f32.mrb[0].mxu0
      %v339 = vadd.f32 %v290, %v338
      %v340 = vpop.f32.mrb[0].mxu0
      %v341 = vpop.f32.mrb[0].mxu0
      %v342 = vpop.f32.mrb[0].mxu0
      %343 = vdwg.mxu0
      %344 = vst [vmem:[#allocation6] sm:$0xff] %v339
    $region41: #{tpu_custom_call.1} parent=1 // pred_fallthru
      _
    // Predicated region
    $region42: #{tpu_custom_call.1} parent=1 // pred_check
      _
    $region43: #{tpu_custom_call.1} parent=1 // pred_check_branch
      %346 = sbr.rel (0) target = $region45
    $region44: #{tpu_custom_call.1} parent=1 // pred_region
      %s348 = ssub.s32 128, 128
      %349 = vsyncadd [#allocation5], %s348
      %s351 = sshll.u32 [#allocation6], 4
      %s352 = int_to_ptr.vmem [resolvable:$true] %s351
      %354 = dma.vmem_to_hbm [thread:$0]  %s352, 128, %s7, [#allocation5]
    $region45: #{tpu_custom_call.1} parent=1 // pred_fallthru
      _
    // Predicated region
    $region46: #{tpu_custom_call.1} parent=1 // pred_check
      _
    $region47: #{tpu_custom_call.1} parent=1 // pred_check_branch
      %356 = sbr.rel (0) target = $region49
    $region48: #{tpu_custom_call.1} parent=1 // pred_region
      %357 = dma.done [#allocation5], 128
    $region49: #{tpu_custom_call.1} parent=1 // pred_fallthru
      _
    %358 = vsyncpa [#allocation4], 1
    %359 = vsyncpa [#allocation5], 1

// kernel: tpu_custom_call.1
$region0: #{tpu_custom_call.1}
  #allocation0 [shape = 'u32[]', space=smem, size = 0x4, offset = 0x4, fixed_abs, tag = 'smem constant byte address 0x4 - core index']
  #allocation1 [shape = 'u32[144,128]{1,0:T(1,128)}', space=vmem, size = 0x12000, scoped, tag = 'internal scratch']
  #allocation2 [shape = 'f32[8,4]{1,0:T(8,128)}', space=vmem, size = 0x1000, scoped, tag = 'scratch operand']
  %s0 = inlined_call_operand.hbm [shape: f32[8,4,256], index: 0, kind: input, shape index: {}]
  %s1 = inlined_call_operand.vmem [shape: bf16[4,12], index: 1, kind: input, shape index: {}]
  %s2 = inlined_call_operand.vmem [shape: f32[1,12], index: 2, kind: input, shape index: {}]
  %s3 = inlined_call_operand.vmem [shape: f32[1,12], index: 3, kind: input, shape index: {}]
  %s4 = inlined_call_operand.vmem [shape: f32[1,12], index: 4, kind: input, shape index: {}]
  %s5 = inlined_call_operand.vmem [shape: bf16[12,128], index: 5, kind: input, shape index: {}]
  %s6 = inlined_call_operand.vmem [shape: f32[1,128], index: 6, kind: input, shape index: {}]
  %s7 = inlined_call_operand.hbm [shape: f32[8,128], index: 7, kind: output, shape index: {}]
  %s8 = sld [smem:[#allocation0]]
  $region50: #{tpu_custom_call.1} parent=0
    _
  %s10 = ssub.s32 1, %s8
  %s11 = scalar_select 0, %s10, %s8
  $region1: #{tpu_custom_call.1} parent=0
    #allocation3 [shape = 'u8[32768]{0}', space=vmem, size = 0x8000, scoped, tag = 'input window, operand 0, single buffered']
    #allocation4 [shape = 's32[1]{0}', space=sflag, size = 0x4, scoped, tag = 'scoped memory for tpu_custom_call.1']
    #allocation5 [shape = 's32[1]{0}', space=sflag, size = 0x4, scoped, tag = 'scoped memory for tpu_custom_call.1']
    #allocation6 [shape = 'u8[4096]{0}', space=vmem, size = 0x1000, scoped, tag = 'output window, operand 0, single buffered']
    %12 = vsyncpa [#allocation4], 0
    %13 = vsyncpa [#allocation5], 0
    // Predicated region
    $region2: #{tpu_custom_call.1} parent=1 // pred_check
      _
    $region3: #{tpu_custom_call.1} parent=1 // pred_check_branch
      %15 = sbr.rel (0) target = $region5
    $region4: #{tpu_custom_call.1} parent=1 // pred_region
      %s17 = ssub.s32 1024, 1024
      %18 = vsyncadd [#allocation4], %s17
      %s19 = sshll.u32 [#allocation3], 4
      %s20 = int_to_ptr.vmem [resolvable:$true] %s19
      %25 = dma.hbm_to_vmem [thread:$0]  %s0, 1024, %s20, [#allocation4], 128, 128, 8
    $region5: #{tpu_custom_call.1} parent=1 // pred_fallthru
      _
    // Predicated region
    $region6: #{tpu_custom_call.1} parent=1 // pred_check
      _
    $region7: #{tpu_custom_call.1} parent=1 // pred_check_branch
      %27 = sbr.rel (0) target = $region9
    $region8: #{tpu_custom_call.1} parent=1 // pred_region
      _
    $region9: #{tpu_custom_call.1} parent=1 // pred_fallthru
      _
    // Predicated region
    $region10: #{tpu_custom_call.1} parent=1 // pred_check
      _
    $region11: #{tpu_custom_call.1} parent=1 // pred_check_branch
      %29 = sbr.rel (0) target = $region13
    $region12: #{tpu_custom_call.1} parent=1 // pred_region
      _
    $region13: #{tpu_custom_call.1} parent=1 // pred_fallthru
      _
    // Predicated region
    $region14: #{tpu_custom_call.1} parent=1 // pred_check
      _
    $region15: #{tpu_custom_call.1} parent=1 // pred_check_branch
      %31 = sbr.rel (0) target = $region17
    $region16: #{tpu_custom_call.1} parent=1 // pred_region
      _
    $region17: #{tpu_custom_call.1} parent=1 // pred_fallthru
      _
    // Predicated region
    $region18: #{tpu_custom_call.1} parent=1 // pred_check
      _
    $region19: #{tpu_custom_call.1} parent=1 // pred_check_branch
      %33 = sbr.rel (0) target = $region21
    $region20: #{tpu_custom_call.1} parent=1 // pred_region
      _
    $region21: #{tpu_custom_call.1} parent=1 // pred_fallthru
      _
    // Predicated region
    $region22: #{tpu_custom_call.1} parent=1 // pred_check
      _
    $region23: #{tpu_custom_call.1} parent=1 // pred_check_branch
      %35 = sbr.rel (0) target = $region25
    $region24: #{tpu_custom_call.1} parent=1 // pred_region
      _
    $region25: #{tpu_custom_call.1} parent=1 // pred_fallthru
      _
    // Predicated region
    $region26: #{tpu_custom_call.1} parent=1 // pred_check
      _
    $region27: #{tpu_custom_call.1} parent=1 // pred_check_branch
      %37 = sbr.rel (0) target = $region29
    $region28: #{tpu_custom_call.1} parent=1 // pred_region
      _
    $region29: #{tpu_custom_call.1} parent=1 // pred_fallthru
      _
    // Predicated region
    $region30: #{tpu_custom_call.1} parent=1 // pred_check
      _
    $region31: #{tpu_custom_call.1} parent=1 // pred_check_branch
      %39 = sbr.rel (0) target = $region33
    $region32: #{tpu_custom_call.1} parent=1 // pred_region
      %40 = dma.done [#allocation4], 1024
    $region33: #{tpu_custom_call.1} parent=1 // pred_fallthru
      _
    %p42 = scmp.eq.s32.totalorder 0, 0
    // Predicated region
    $region34: #{tpu_custom_call.1} parent=1 // pred_check
      %p43 = pneg %p42
    $region35: #{tpu_custom_call.1} parent=1 // pred_check_branch
      %45 = sbr.rel (%p43) target = $region37
    $region36: #{tpu_custom_call.1} parent=1 // pred_region
      %vm46 = vcmask 31744
      %47 = vst.msk [vmem:[#allocation2] sm:$0xff] %vm46, 0.0
    $region37: #{tpu_custom_call.1} parent=1 // pred_fallthru
      _
    %v48 = vld [vmem:[#allocation2] sm:$0xff]
    %v49 = vld [vmem:[#allocation3] sm:$0xff]
    %v50 = vld [vmem:[#allocation3 + $0x8] sm:$0xff]
    %v51 = vld [vmem:[#allocation3 + $0x10] sm:$0xff]
    %v52 = vld [vmem:[#allocation3 + $0x18] sm:$0xff]
    %v53 = vld [vmem:[#allocation3 + $0x20] sm:$0xff]
    %v54 = vld [vmem:[#allocation3 + $0x28] sm:$0xff]
    %v55 = vld [vmem:[#allocation3 + $0x30] sm:$0xff]
    %v56 = vld [vmem:[#allocation3 + $0x38] sm:$0xff]
    %v65 = vcombine.high %v49, %v49
    %v66 = vcombine.high %v50, %v50
    %v67 = vcombine.high %v51, %v51
    %v68 = vcombine.high %v52, %v52
    %v69 = vcombine.high %v53, %v53
    %v70 = vcombine.high %v54, %v54
    %v71 = vcombine.high %v55, %v55
    %v72 = vcombine.high %v56, %v56
    %vm81 = vcmask 1043456
    %v82 = vsel %vm81, %v49, 0.0
    %v83 = vsel %vm81, %v65, 0.0
    %v84 = vadd.f32 %v82, %v83
    %85 = vadd.xlane.f32.xlu0 %v84
    %v86 = vpop.xlane.xlu0 %85
    %v87 = vsel %vm81, %v50, 0.0
    %v88 = vsel %vm81, %v66, 0.0
    %v89 = vadd.f32 %v87, %v88
    %90 = vadd.xlane.f32.xlu0 %v89
    %v91 = vpop.xlane.xlu0 %90
    %v92 = vsel %vm81, %v51, 0.0
    %v93 = vsel %vm81, %v67, 0.0
    %v94 = vadd.f32 %v92, %v93
    %95 = vadd.xlane.f32.xlu0 %v94
    %v96 = vpop.xlane.xlu0 %95
    %v97 = vsel %vm81, %v52, 0.0
    %v98 = vsel %vm81, %v68, 0.0
    %v99 = vadd.f32 %v97, %v98
    %100 = vadd.xlane.f32.xlu0 %v99
    %v101 = vpop.xlane.xlu0 %100
    %v102 = vsel %vm81, %v53, 0.0
    %v103 = vsel %vm81, %v69, 0.0
    %v104 = vadd.f32 %v102, %v103
    %105 = vadd.xlane.f32.xlu0 %v104
    %v106 = vpop.xlane.xlu0 %105
    %v107 = vsel %vm81, %v54, 0.0
    %v108 = vsel %vm81, %v70, 0.0
    %v109 = vadd.f32 %v107, %v108
    %110 = vadd.xlane.f32.xlu0 %v109
    %v111 = vpop.xlane.xlu0 %110
    %v112 = vsel %vm81, %v55, 0.0
    %v113 = vsel %vm81, %v71, 0.0
    %v114 = vadd.f32 %v112, %v113
    %115 = vadd.xlane.f32.xlu0 %v114
    %v116 = vpop.xlane.xlu0 %115
    %v117 = vsel %vm81, %v56, 0.0
    %v118 = vsel %vm81, %v72, 0.0
    %v119 = vadd.f32 %v117, %v118
    %120 = vadd.xlane.f32.xlu0 %v119
    %v121 = vpop.xlane.xlu0 %120
    %v130 = vlaneseq
    %v131 = vand.u32 %v130, 127
    %v132 = vlaneseq
    %v133 = vshrl.u32 %v132, 7
    %v134 = vsub.s32 %v131, %v133
    %v135 = vrot.slane %v86, %v134
    %v136 = vlaneseq
    %v137 = vshrl.u32 %v136, 7
    %v138 = vsub.s32 %v131, %v137
    %v139 = vrot.slane %v91, %v138
    %v140 = vlaneseq
    %v141 = vshrl.u32 %v140, 7
    %v142 = vsub.s32 %v131, %v141
    %v143 = vrot.slane %v96, %v142
    %v144 = vlaneseq
    %v145 = vshrl.u32 %v144, 7
    %v146 = vsub.s32 %v131, %v145
    %v147 = vrot.slane %v101, %v146
    %v148 = vlaneseq
    %v149 = vshrl.u32 %v148, 7
    %v150 = vsub.s32 %v131, %v149
    %v151 = vrot.slane %v106, %v150
    %v152 = vlaneseq
    %v153 = vshrl.u32 %v152, 7
    %v154 = vsub.s32 %v131, %v153
    %v155 = vrot.slane %v111, %v154
    %v156 = vlaneseq
    %v157 = vshrl.u32 %v156, 7
    %v158 = vsub.s32 %v131, %v157
    %v159 = vrot.slane %v116, %v158
    %v160 = vlaneseq
    %v161 = vshrl.u32 %v160, 7
    %v162 = vsub.s32 %v131, %v161
    %v163 = vrot.slane %v121, %v162
    %vm164 = vcmask 1041409
    %v165 = vsel %vm164, %v139, %v135
    %vm166 = vcmask 1042434
    %v167 = vsel %vm166, %v143, %v165
    %vm168 = vcmask 1043459
    %v169 = vsel %vm168, %v147, %v167
    %vm170 = vcmask 1044484
    %v171 = vsel %vm170, %v151, %v169
    %vm172 = vcmask 1045509
    %v173 = vsel %vm172, %v155, %v171
    %vm174 = vcmask 1046534
    %v175 = vsel %vm174, %v159, %v173
    %vm176 = vcmask 1047559
    %v177 = vsel %vm176, %v163, %v175
    %v179 = vadd.f32 %v48, %v177
    %vm180 = vcmask 31744
    %181 = vst.msk [vmem:[#allocation2] sm:$0xff] %vm180, %v179
    // Predicated region
    $region38: #{tpu_custom_call.1} parent=1 // pred_check
      %p182 = pneg %p42
    $region39: #{tpu_custom_call.1} parent=1 // pred_check_branch
      %184 = sbr.rel (%p182) target = $region41
    $region40: #{tpu_custom_call.1} parent=1 // pred_region
      %v185 = vld [vmem:[#allocation2] sm:$0xff]
      %v186 = vmul.f32 %v185, 0.00390625
      %v187 = vpack.c.bf16 %v186, %v186
      %v188 = vld [vmem:[%s1] sm:$0x3]
      %v189 = vld [vmem:[%s2] sm:$0x1]
      %v191 = vlaneseq
      %v192 = vshrl.u32 %v191, 7
      %v193 = vsub.s32 0, %v192
      %v194 = vrot.slane %v189, %v193
      %v197 = vsel %vm180, %v187, 0
      %vm199 = vcmask 1041408
      %v201 = vsel %vm199, %v188, 0
      %203 = vmatprep.subr.bf16.mxu0 0
      %204 = vmatpush1.bf16.msra.mxu0 %v201
      %205 = vmatprep.subr.bf16.mxu0 0
      %206 = vmatpush1.bf16.msra.mxu0 0
      %207 = vmatprep.subr.bf16.mxu0 0
      %208 = vmatpush1.bf16.msra.mxu0 0
      %209 = vmatprep.subr.bf16.mxu0 0
      %210 = vmatpush1.bf16.msra.mxu0 0
      %211 = vmatprep.subr.bf16.mxu0 0
      %212 = vmatpush1.bf16.msra.mxu0 0
      %213 = vmatprep.subr.bf16.mxu0 0
      %214 = vmatpush1.bf16.msra.mxu0 0
      %215 = vmatprep.subr.bf16.mxu0 0
      %216 = vmatpush1.bf16.msra.mxu0 0
      %217 = vmatprep.subr.bf16.mxu0 0
      %218 = vmatpush1.bf16.msra.mxu0 0
      %219 = vmatprep.subr.bf16.mxu0 0
      %220 = vmatpush1.bf16.msra.mxu0 0
      %221 = vmatprep.subr.bf16.mxu0 0
      %222 = vmatpush1.bf16.msra.mxu0 0
      %223 = vmatprep.subr.bf16.mxu0 0
      %224 = vmatpush1.bf16.msra.mxu0 0
      %225 = vmatprep.subr.bf16.mxu0 0
      %226 = vmatpush1.bf16.msra.mxu0 0
      %227 = vmatprep.subr.bf16.mxu0 0
      %228 = vmatpush1.bf16.msra.mxu0 0
      %229 = vmatprep.subr.bf16.mxu0 0
      %230 = vmatpush1.bf16.msra.mxu0 0
      %231 = vmatprep.subr.bf16.mxu0 0
      %232 = vmatpush1.bf16.msra.mxu0 0
      %233 = vmatprep.subr.bf16.mxu0 0
      %234 = vmatpush1.bf16.msra.mxu0 0
      %235 = vmatprep.mubr.bf16.mxu0 0
      %236 = vmatmul.mubr.bf16.gmra.mrb[0].mxu0 %v197
      %v237 = vpop.f32.mrb[0].mxu0
      %v238 = vadd.f32 %v194, %v237
      %v239 = vpop.f32.mrb[0].mxu0
      %v240 = vpop.f32.mrb[0].mxu0
      %v241 = vpop.f32.mrb[0].mxu0
      %242 = vdwg.mxu0
      %v243 = vmul.f32 %v238, 0.5
      %v244 = vmul.f32 %v238, 0.70710677
      %v245 = verf.f32.pop %v244
      %v246 = vadd.f32 %v245, 1.0
      %v247 = vmul.f32 %v243, %v246
      %vm248 = vcmask 97280
      %v249 = vsel %vm248, %v247, 0.0
      %250 = vadd.xlane.f32.xlu0 %v249
      %v251 = vpop.xlane.xlu0 %250
      %v252 = vrcp.pop 12.0
      %v253 = vmul.f32 %v251, %v252
      %v254 = vmul.f32 %v247, %v247
      %v255 = vsel %vm248, %v254, 0.0
      %256 = vadd.xlane.f32.xlu0 %v255
      %v257 = vpop.xlane.xlu0 %256
      %v258 = vmul.f32 %v257, %v252
      %v259 = vmul.f32 %v253, %v253
      %v260 = vsub.f32 %v258, %v259
      %v261 = vmax.f32 %v260, 0.0
      %v262 = vsub.f32 %v247, %v253
      %v263 = vadd.f32 %v261, 1e-06
      %v264 = vrsqrt.pop %v263
      %v265 = vmul.f32 %v262, %v264
      %v266 = vld [vmem:[%s3] sm:$0x1]
      %v268 = vlaneseq
      %v269 = vshrl.u32 %v268, 7
      %v270 = vsub.s32 0, %v269
      %v271 = vrot.slane %v266, %v270
      %v273 = vmul.f32 %v265, %v271
      %v274 = vld [vmem:[%s4] sm:$0x1]
      %v276 = vlaneseq
      %v277 = vshrl.u32 %v276, 7
      %v278 = vsub.s32 0, %v277
      %v279 = vrot.slane %v274, %v278
      %v281 = vadd.f32 %v273, %v279
      %v282 = vpack.c.bf16 %v281, %v281
      %v283 = vld [vmem:[%s5] sm:$0xf]
      %v284 = vld [vmem:[%s5 + $0x4] sm:$0x3]
      %v285 = vld [vmem:[%s6] sm:$0x1]
      %v287 = vlaneseq
      %v288 = vshrl.u32 %v287, 7
      %v289 = vsub.s32 0, %v288
      %v290 = vrot.slane %v285, %v289
      %v294 = vunpack.c.l.b16 %v283
      %v295 = vunpack.c.l.b16 %v284
      %v296 = vpack.c.b16 %v295, %v294
      %v298 = vsel %vm248, %v282, 0
      %vm300 = vcmask 1045504
      %v302 = vsel %vm300, %v296, 0
      %304 = vmatprep.subr.bf16.mxu0 0
      %305 = vmatpush1.bf16.msra.mxu0 %v302
      %306 = vmatprep.subr.bf16.mxu0 0
      %307 = vmatpush1.bf16.msra.mxu0 0
      %308 = vmatprep.subr.bf16.mxu0 0
      %309 = vmatpush1.bf16.msra.mxu0 0
      %310 = vmatprep.subr.bf16.mxu0 0
      %311 = vmatpush1.bf16.msra.mxu0 0
      %312 = vmatprep.subr.bf16.mxu0 0
      %313 = vmatpush1.bf16.msra.mxu0 0
      %314 = vmatprep.subr.bf16.mxu0 0
      %315 = vmatpush1.bf16.msra.mxu0 0
      %316 = vmatprep.subr.bf16.mxu0 0
      %317 = vmatpush1.bf16.msra.mxu0 0
      %318 = vmatprep.subr.bf16.mxu0 0
      %319 = vmatpush1.bf16.msra.mxu0 0
      %320 = vmatprep.subr.bf16.mxu0 0
      %321 = vmatpush1.bf16.msra.mxu0 0
      %322 = vmatprep.subr.bf16.mxu0 0
      %323 = vmatpush1.bf16.msra.mxu0 0
      %324 = vmatprep.subr.bf16.mxu0 0
      %325 = vmatpush1.bf16.msra.mxu0 0
      %326 = vmatprep.subr.bf16.mxu0 0
      %327 = vmatpush1.bf16.msra.mxu0 0
      %328 = vmatprep.subr.bf16.mxu0 0
      %329 = vmatpush1.bf16.msra.mxu0 0
      %330 = vmatprep.subr.bf16.mxu0 0
      %331 = vmatpush1.bf16.msra.mxu0 0
      %332 = vmatprep.subr.bf16.mxu0 0
      %333 = vmatpush1.bf16.msra.mxu0 0
      %334 = vmatprep.subr.bf16.mxu0 0
      %335 = vmatpush1.bf16.msra.mxu0 0
      %336 = vmatprep.mubr.bf16.mxu0 0
      %337 = vmatmul.mubr.bf16.gmra.mrb[0].mxu0 %v298
      %v338 = vpop.f32.mrb[0].mxu0
      %v339 = vadd.f32 %v290, %v338
      %v340 = vpop.f32.mrb[0].mxu0
      %v341 = vpop.f32.mrb[0].mxu0
      %v342 = vpop.f32.mrb[0].mxu0
      %343 = vdwg.mxu0
      %344 = vst [vmem:[#allocation6] sm:$0xff] %v339
    $region41: #{tpu_custom_call.1} parent=1 // pred_fallthru
      _
    // Predicated region
    $region42: #{tpu_custom_call.1} parent=1 // pred_check
      _
    $region43: #{tpu_custom_call.1} parent=1 // pred_check_branch
      %346 = sbr.rel (0) target = $region45
    $region44: #{tpu_custom_call.1} parent=1 // pred_region
      %s348 = ssub.s32 128, 128
      %349 = vsyncadd [#allocation5], %s348
      %s351 = sshll.u32 [#allocation6], 4
      %s352 = int_to_ptr.vmem [resolvable:$true] %s351
      %354 = dma.vmem_to_hbm [thread:$0]  %s352, 128, %s7, [#allocation5]
    $region45: #{tpu_custom_call.1} parent=1 // pred_fallthru
      _
    // Predicated region
    $region46: #{tpu_custom_call.1} parent=1 // pred_check
      _
    $region47: #{tpu_custom_call.1} parent=1 // pred_check_branch
      %356 = sbr.rel (0) target = $region49
    $region48: #{tpu_custom_call.1} parent=1 // pred_region
      %357 = dma.done [#allocation5], 128
    $region49: #{tpu_custom_call.1} parent=1 // pred_fallthru
      _
    %358 = vsyncpa [#allocation4], 1
    %359 = vsyncpa [#allocation5], 1

</llo_original>
